<compile_context>
chip_gen: v7x
topology: tpu7x:2x2x1
jax: 0.10.0
libtpu: 0.0.40
codegen_flags: <defaults>
</compile_context>

<pallas_src>
import math

import jax
import jax.numpy as jnp
from jax.experimental import pallas as pl
from jax.experimental.pallas import tpu as pltpu


def _round_up(x, m):
    return ((x + m - 1) // m) * m


def _cdiv(a, b):
    return (a + b - 1) // b


_ROW_GRAN = 16                 # bf16 sublane tile (also a multiple of f32's 8)
_TB_CAP = 512                  # large tiles amortize ~0.35us per-grid-step overhead
_VMEM_CAP_BYTES = 48 << 20     # generation-safe ceiling (v7x: 64 MiB physical)


def _make_kernel(n_pieces):
    """out = relu( sum_k dot(x_k, w_k) + b ); bf16 inputs, f32 accumulate/epilogue."""

    def kernel(*refs):
        x_refs = refs[:n_pieces]
        w_refs = refs[n_pieces:2 * n_pieces]
        b_ref = refs[2 * n_pieces]
        o_ref = refs[2 * n_pieces + 1]

        acc = jnp.dot(x_refs[0][...], w_refs[0][...],
                      preferred_element_type=jnp.float32)
        for xr, wr in zip(x_refs[1:], w_refs[1:]):
            acc = acc + jnp.dot(xr[...], wr[...],
                                preferred_element_type=jnp.float32)
        # f32 bias broadcast + ReLU epilogue (keep f32: v5e VPU has no bf16 path).
        o_ref[...] = jnp.maximum(acc + b_ref[...], 0.0)

    return kernel


def _vmem_needed_bytes(tb, group_dims, o_pad, resident_single_buffer):
    """Per-step VMEM footprint estimate (bytes)."""
    w_copies = 1 if resident_single_buffer else 2
    act = 2 * sum(tb * d * 2 for d in group_dims)          # bf16 acts, double-buffered
    out = 2 * tb * o_pad * 4                                # f32 out, double-buffered
    wgt = w_copies * sum(d * o_pad * 2 for d in group_dims)  # bf16 weights, resident
    bias = w_copies * o_pad * 4
    return act + out + wgt + bias


def fused_fc_relu(pieces, weights, bias2d, tb):
    """pieces[k]: (B_pad, Dk) bf16, weights[k]: (Dk, O_pad) bf16, bias2d: (1, O_pad) f32.

    B_pad is a multiple of tb; tb is a multiple of 16; O_pad is a multiple of 128.
    K dims are NOT padded. Returns (B_pad, O_pad) f32.
    """
    n = len(pieces)
    b_pad = pieces[0].shape[0]
    o_pad = bias2d.shape[1]
    grid = (b_pad // tb,)
    group_dims = [p.shape[1] for p in pieces]

    flops = 2 * b_pad * sum(group_dims) * o_pad
    bytes_accessed = (sum(b_pad * d * 2 for d in group_dims)     # activations (bf16)
                      + sum(d * o_pad * 2 for d in group_dims)   # weights (bf16)
                      + o_pad * 4                                 # bias
                      + b_pad * o_pad * 4)                        # output (f32)
    cost = pl.CostEstimate(flops=flops, transcendentals=0,
                           bytes_accessed=bytes_accessed)

    def build(resident_single_buffer):
        def resident(shape):
            if resident_single_buffer:
                # Constant block (0,0) every step -> a single VMEM copy suffices.
                return pl.BlockSpec(shape, lambda i: (0, 0),
                                    pipeline_mode=pl.Buffered(1))
            return pl.BlockSpec(shape, lambda i: (0, 0))

        in_specs = (
            # batch-tiled bf16 activations (double-buffered over the batch axis)
            [pl.BlockSpec((tb, d), lambda i: (i, 0)) for d in group_dims]
            # weights + bias: full arrays, VMEM-resident across all batch tiles
            + [resident(w.shape) for w in weights]
            + [resident((1, o_pad))]
        )

        needed = _vmem_needed_bytes(tb, group_dims, o_pad, resident_single_buffer)
        vmem_limit = int(min(max(needed + (4 << 20), 24 << 20), _VMEM_CAP_BYTES))

        return pl.pallas_call(
            _make_kernel(n),
            out_shape=jax.ShapeDtypeStruct((b_pad, o_pad), jnp.float32),
            grid_spec=pltpu.PrefetchScalarGridSpec(
                num_scalar_prefetch=0,
                grid=grid,
                in_specs=in_specs,
                out_specs=pl.BlockSpec((tb, o_pad), lambda i: (i, 0)),
            ),
            compiler_params=pltpu.CompilerParams(
                # batch tiles are independent -> parallel (uses both TCs on v7x)
                dimension_semantics=("parallel",),
                vmem_limit_bytes=vmem_limit),
            cost_estimate=cost,
        )

    try:
        return build(True)(*pieces, *weights, bias2d)
    except Exception:
        # Fallback for versions where pipeline_mode=pl.Buffered(1) on a resident
        # pallas_call BlockSpec is rejected: plain (double-buffered) specs.
        return build(False)(*pieces, *weights, bias2d)


class MazeFeatureExtractorPallas:
    """JAX/Pallas port of MazeFeatureExtractor (forward only, ReLU activation)."""

    def __init__(self, input_sizes, output_size, relevant_keys=None, seed=0):
        if relevant_keys is None:
            relevant_keys = list(input_sizes.keys())
        self.relevant_keys = relevant_keys
        self.input_sizes = input_sizes
        self.output_size = output_size

        # Per-key flattened feature widths.
        self.key_dims = {}
        for k in self.relevant_keys:
            if k == 'image':
                c, h, w = input_sizes[k]
                self.key_dims[k] = c * h * w
            else:
                self.key_dims[k] = input_sizes[k][0]
        self.input_size = sum(self.key_dims.values())

        # Group consecutive non-image keys into ONE concatenated piece so tiny
        # keys share a single DMA stream and a single MXU push.
        groups, cur = [], []
        for k in self.relevant_keys:
            if k == 'image':
                if cur:
                    groups.append(cur)
                    cur = []
                groups.append([k])
            else:
                cur.append(k)
        if cur:
            groups.append(cur)
        self.groups = groups
        self.group_dims = [sum(self.key_dims[k] for k in g) for g in groups]

        if output_size != 0:
            self.o_pad = _round_up(output_size, 128)
            # Deterministic init mimicking nn.Linear default: U(-1/sqrt(D), 1/sqrt(D)).
            key = jax.random.PRNGKey(seed)
            kw, kb = jax.random.split(key)
            bound = 1.0 / math.sqrt(float(self.input_size))
            w_full = jax.random.uniform(
                kw, (self.input_size, output_size), jnp.float32, -bound, bound)
            b = jax.random.uniform(kb, (output_size,), jnp.float32, -bound, bound)

            # Split the (D, O) weight per group.  Only the output dim is padded
            # (lane-dense multiple of 128); K stays at its true width.  bf16 storage.
            self.w_groups = []
            off = 0
            for dg in self.group_dims:
                wg = jnp.zeros((dg, self.o_pad), jnp.float32)
                wg = wg.at[:, :output_size].set(w_full[off:off + dg])
                self.w_groups.append(wg.astype(jnp.bfloat16))
                off += dg
            # Bias kept in f32 (epilogue is f32), zero-padded to O_pad lanes.
            self.b_pad = jnp.zeros((1, self.o_pad), jnp.float32)
            self.b_pad = self.b_pad.at[0, :output_size].set(b)
        else:
            self.w_groups = None
            self.b_pad = None
            self.o_pad = 0

    def __call__(self, inputs):
        if self.output_size == 0:
            # Matches torch.zeros(0) in the reference module (no kernel needed).
            return jnp.zeros((0,), jnp.float32)

        flat = {}
        for k in self.relevant_keys:
            v = jnp.asarray(inputs[k])
            if k == 'image':
                nd = v.ndim
                if nd > 3:
                    v = v.reshape(*v.shape[:nd - 3], -1)
                elif nd == 3:
                    v = v.reshape(-1)
                else:
                    raise NotImplementedError
            flat[k] = v

        lead = flat[self.relevant_keys[0]].shape[:-1]
        B = 1
        for s in lead:
            B *= int(s)
        B = max(B, 1)

        # Batch tiling: >=2 tiles when B is large enough (feeds both v7x TCs),
        # tile sized near B/n_tiles to bound row-padding waste, capped at _TB_CAP.
        n_tiles = max(_cdiv(B, _TB_CAP), 2 if B >= 2 * _ROW_GRAN else 1)
        tb = _round_up(_cdiv(B, n_tiles), _ROW_GRAN)
        # Shrink the tile if it would not fit the generation-safe VMEM budget.
        while (_vmem_needed_bytes(tb, self.group_dims, self.o_pad, False)
               > (_VMEM_CAP_BYTES - (4 << 20)) and tb > _ROW_GRAN):
            tb = max(_ROW_GRAN, _round_up(tb // 2, _ROW_GRAN))
        b_pad_rows = _round_up(B, tb)

        pieces = []
        for g in self.groups:
            parts = [flat[k].reshape(B, self.key_dims[k]) for k in g]
            x = parts[0] if len(parts) == 1 else jnp.concatenate(parts, axis=-1)
            # bf16 cast fused into the single wrapper pad (halves HBM->VMEM DMA).
            # Only rows are padded; the K dim keeps its true width.
            x = jnp.pad(x.astype(jnp.bfloat16), ((0, b_pad_rows - B), (0, 0)))
            pieces.append(x)

        out_full = fused_fc_relu(pieces, self.w_groups, self.b_pad, tb)
        out = out_full[:B, :self.output_size]
        return out.reshape(*lead, self.output_size)


if __name__ == "__main__":
    key = jax.random.PRNGKey(0)
    k_img, k_state = jax.random.split(key)

    # Small shapes consistent with the module: image (C,H,W)=(4,8,8), state (6,)
    B = 2
    input_sizes = {'image': (4, 8, 8), 'state': (6,)}
    output_size = 32

    inputs = {
        'image': jax.random.normal(k_img, (B, 4, 8, 8), jnp.float32),   # NCHW
        'state': jax.random.normal(k_state, (B, 6), jnp.float32),
    }

    model = MazeFeatureExtractorPallas(
        input_sizes, output_size, relevant_keys=['image', 'state'], seed=0)

    out = jax.block_until_ready(model(inputs))
    assert out.shape == (B, output_size), out.shape

    # Reference in plain JAX using identical bf16-input / f32-accumulate math.
    x_img = inputs['image'].reshape(B, -1).astype(jnp.bfloat16)
    x_st = inputs['state'].astype(jnp.bfloat16)
    x_cat = jnp.concatenate([x_img, x_st], axis=-1)
    w_cat = jnp.concatenate(model.w_groups, axis=0)
    ref = jnp.dot(x_cat, w_cat, preferred_element_type=jnp.float32)
    ref = jnp.maximum(ref + model.b_pad, 0.0)[:, :output_size]
    max_err = float(jnp.max(jnp.abs(out - ref)))
    assert jnp.allclose(out, ref, atol=2e-2, rtol=2e-2), max_err

    # Also exercise the rank-3 (no-batch) image path from the torch module.
    inputs1 = {'image': inputs['image'][0], 'state': inputs['state'][0]}
    out1 = jax.block_until_ready(model(inputs1))
    assert out1.shape == (output_size,), out1.shape
    assert jnp.allclose(out1, ref[0], atol=2e-2, rtol=2e-2)

    print("KERNEL_OK")
</pallas_src>

<mosaic_0001>
module attributes {stable_mosaic.version = 11 : i64} {
  func.func @kernel(%arg0: i32, %arg1: memref<16x256xbf16, #tpu.memory_space<vmem>>, %arg2: memref<16x6xbf16, #tpu.memory_space<vmem>>, %arg3: memref<256x128xbf16, #tpu.memory_space<vmem>>, %arg4: memref<6x128xbf16, #tpu.memory_space<vmem>>, %arg5: memref<1x128xf32, #tpu.memory_space<vmem>>, %arg6: memref<16x128xf32, #tpu.memory_space<vmem>>) attributes {dimension_semantics = [#tpu.dimension_semantics<parallel>], iteration_bounds = array<i64: 1>, scalar_prefetch = 0 : i64, scratch_operands = 0 : i64, tpu.core_type = #tpu.core_type<tc>, window_params = [{transform_indices = @transform_0, window_bounds = array<i64: 16, 256>}, {transform_indices = @transform_1, window_bounds = array<i64: 16, 6>}, {pipeline_mode = #tpu.pipeline_mode<synchronous>, transform_indices = @transform_2, window_bounds = array<i64: 256, 128>}, {pipeline_mode = #tpu.pipeline_mode<synchronous>, transform_indices = @transform_3, window_bounds = array<i64: 6, 128>}, {pipeline_mode = #tpu.pipeline_mode<synchronous>, transform_indices = @transform_4, window_bounds = array<i64: 1, 128>}, {transform_indices = @transform_5, window_bounds = array<i64: 16, 128>}]} {
    %c0 = arith.constant 0 : index
    %c0_0 = arith.constant 0 : index
    %0 = vector.load %arg1[%c0, %c0_0] : memref<16x256xbf16, #tpu.memory_space<vmem>>, vector<16x256xbf16>
    %c0_1 = arith.constant 0 : index
    %c0_2 = arith.constant 0 : index
    %1 = vector.load %arg3[%c0_1, %c0_2] : memref<256x128xbf16, #tpu.memory_space<vmem>>, vector<256x128xbf16>
    %cst = arith.constant dense<0.000000e+00> : vector<16x128xf32>
    %2 = tpu.matmul %0, %1, %cst {dimension_numbers = #tpu.dot_dimension_numbers<[1], [0], [0], [1], [0, 0, 1, 1], [], []>} : vector<16x256xbf16>, vector<256x128xbf16>, vector<16x128xf32> -> vector<16x128xf32>
    %c0_3 = arith.constant 0 : index
    %c0_4 = arith.constant 0 : index
    %3 = vector.load %arg2[%c0_3, %c0_4] : memref<16x6xbf16, #tpu.memory_space<vmem>>, vector<16x6xbf16>
    %c0_5 = arith.constant 0 : index
    %c0_6 = arith.constant 0 : index
    %4 = vector.load %arg4[%c0_5, %c0_6] : memref<6x128xbf16, #tpu.memory_space<vmem>>, vector<6x128xbf16>
    %cst_7 = arith.constant dense<0.000000e+00> : vector<16x128xf32>
    %5 = tpu.matmul %3, %4, %cst_7 {dimension_numbers = #tpu.dot_dimension_numbers<[1], [0], [0], [1], [0, 0, 1, 1], [], []>} : vector<16x6xbf16>, vector<6x128xbf16>, vector<16x128xf32> -> vector<16x128xf32>
    %6 = arith.addf %2, %5 : vector<16x128xf32>
    %c0_8 = arith.constant 0 : index
    %c0_9 = arith.constant 0 : index
    %7 = vector.load %arg5[%c0_8, %c0_9] : memref<1x128xf32, #tpu.memory_space<vmem>>, vector<1x128xf32>
    %8 = vector.broadcast %7 : vector<1x128xf32> to vector<16x128xf32>
    %9 = arith.addf %6, %8 : vector<16x128xf32>
    %cst_10 = arith.constant 0.000000e+00 : f32
    %10 = vector.broadcast %cst_10 : f32 to vector<16x128xf32>
    %11 = arith.maximumf %9, %10 : vector<16x128xf32>
    %c0_11 = arith.constant 0 : index
    %c0_12 = arith.constant 0 : index
    %12 = vector.load %arg6[%c0_11, %c0_12] : memref<16x128xf32, #tpu.memory_space<vmem>>, vector<16x128xf32>
    tpu.vector_store %arg6[%c0_11, %c0_12], %11 {strides = array<i32>} : memref<16x128xf32, #tpu.memory_space<vmem>>, vector<16x128xf32>,
    return
  }
  func.func @transform_0(%arg0: i32) -> (i32, i32) {
    %c0_i32 = arith.constant 0 : i32
    %c0_i32_0 = arith.constant 0 : i32
    return %arg0, %c0_i32 : i32, i32
  }
  func.func @transform_1(%arg0: i32) -> (i32, i32) {
    %c0_i32 = arith.constant 0 : i32
    %c0_i32_0 = arith.constant 0 : i32
    return %arg0, %c0_i32 : i32, i32
  }
  func.func @transform_2(%arg0: i32) -> (i32, i32) {
    %c0_i32 = arith.constant 0 : i32
    %c0_i32_0 = arith.constant 0 : i32
    %c0_i32_1 = arith.constant 0 : i32
    return %c0_i32, %c0_i32_0 : i32, i32
  }
  func.func @transform_3(%arg0: i32) -> (i32, i32) {
    %c0_i32 = arith.constant 0 : i32
    %c0_i32_0 = arith.constant 0 : i32
    %c0_i32_1 = arith.constant 0 : i32
    return %c0_i32, %c0_i32_0 : i32, i32
  }
  func.func @transform_4(%arg0: i32) -> (i32, i32) {
    %c0_i32 = arith.constant 0 : i32
    %c0_i32_0 = arith.constant 0 : i32
    %c0_i32_1 = arith.constant 0 : i32
    return %c0_i32, %c0_i32_0 : i32, i32
  }
  func.func @transform_5(%arg0: i32) -> (i32, i32) {
    %c0_i32 = arith.constant 0 : i32
    %c0_i32_0 = arith.constant 0 : i32
    return %arg0, %c0_i32 : i32, i32
  }
}

module attributes {stable_mosaic.version = 11 : i64} {
  func.func @kernel(%arg0: i32, %arg1: memref<16x256xbf16, #tpu.memory_space<vmem>>, %arg2: memref<16x6xbf16, #tpu.memory_space<vmem>>, %arg3: memref<256x128xbf16, #tpu.memory_space<vmem>>, %arg4: memref<6x128xbf16, #tpu.memory_space<vmem>>, %arg5: memref<1x128xf32, #tpu.memory_space<vmem>>, %arg6: memref<16x128xf32, #tpu.memory_space<vmem>>) attributes {dimension_semantics = [#tpu.dimension_semantics<parallel>], iteration_bounds = array<i64: 1>, scalar_prefetch = 0 : i64, scratch_operands = 0 : i64, tpu.core_type = #tpu.core_type<tc>, window_params = [{transform_indices = @transform_0, window_bounds = array<i64: 16, 256>}, {transform_indices = @transform_1, window_bounds = array<i64: 16, 6>}, {pipeline_mode = #tpu.pipeline_mode<synchronous>, transform_indices = @transform_2, window_bounds = array<i64: 256, 128>}, {pipeline_mode = #tpu.pipeline_mode<synchronous>, transform_indices = @transform_3, window_bounds = array<i64: 6, 128>}, {pipeline_mode = #tpu.pipeline_mode<synchronous>, transform_indices = @transform_4, window_bounds = array<i64: 1, 128>}, {transform_indices = @transform_5, window_bounds = array<i64: 16, 128>}]} {
    %c0 = arith.constant 0 : index
    %c0_0 = arith.constant 0 : index
    %0 = vector.load %arg1[%c0, %c0_0] : memref<16x256xbf16, #tpu.memory_space<vmem>>, vector<16x256xbf16>
    %c0_1 = arith.constant 0 : index
    %c0_2 = arith.constant 0 : index
    %1 = vector.load %arg3[%c0_1, %c0_2] : memref<256x128xbf16, #tpu.memory_space<vmem>>, vector<256x128xbf16>
    %cst = arith.constant dense<0.000000e+00> : vector<16x128xf32>
    %2 = tpu.matmul %0, %1, %cst {dimension_numbers = #tpu.dot_dimension_numbers<[1], [0], [0], [1], [0, 0, 1, 1], [], []>} : vector<16x256xbf16>, vector<256x128xbf16>, vector<16x128xf32> -> vector<16x128xf32>
    %c0_3 = arith.constant 0 : index
    %c0_4 = arith.constant 0 : index
    %3 = vector.load %arg2[%c0_3, %c0_4] : memref<16x6xbf16, #tpu.memory_space<vmem>>, vector<16x6xbf16>
    %c0_5 = arith.constant 0 : index
    %c0_6 = arith.constant 0 : index
    %4 = vector.load %arg4[%c0_5, %c0_6] : memref<6x128xbf16, #tpu.memory_space<vmem>>, vector<6x128xbf16>
    %cst_7 = arith.constant dense<0.000000e+00> : vector<16x128xf32>
    %5 = tpu.matmul %3, %4, %cst_7 {dimension_numbers = #tpu.dot_dimension_numbers<[1], [0], [0], [1], [0, 0, 1, 1], [], []>} : vector<16x6xbf16>, vector<6x128xbf16>, vector<16x128xf32> -> vector<16x128xf32>
    %6 = arith.addf %2, %5 : vector<16x128xf32>
    %c0_8 = arith.constant 0 : index
    %c0_9 = arith.constant 0 : index
    %7 = vector.load %arg5[%c0_8, %c0_9] : memref<1x128xf32, #tpu.memory_space<vmem>>, vector<1x128xf32>
    %8 = vector.broadcast %7 : vector<1x128xf32> to vector<16x128xf32>
    %9 = arith.addf %6, %8 : vector<16x128xf32>
    %cst_10 = arith.constant 0.000000e+00 : f32
    %10 = vector.broadcast %cst_10 : f32 to vector<16x128xf32>
    %11 = arith.maximumf %9, %10 : vector<16x128xf32>
    %c0_11 = arith.constant 0 : index
    %c0_12 = arith.constant 0 : index
    %12 = vector.load %arg6[%c0_11, %c0_12] : memref<16x128xf32, #tpu.memory_space<vmem>>, vector<16x128xf32>
    tpu.vector_store %arg6[%c0_11, %c0_12], %11 {strides = array<i32>} : memref<16x128xf32, #tpu.memory_space<vmem>>, vector<16x128xf32>,
    return
  }
  func.func @transform_0(%arg0: i32) -> (i32, i32) {
    %c0_i32 = arith.constant 0 : i32
    %c0_i32_0 = arith.constant 0 : i32
    return %arg0, %c0_i32 : i32, i32
  }
  func.func @transform_1(%arg0: i32) -> (i32, i32) {
    %c0_i32 = arith.constant 0 : i32
    %c0_i32_0 = arith.constant 0 : i32
    return %arg0, %c0_i32 : i32, i32
  }
  func.func @transform_2(%arg0: i32) -> (i32, i32) {
    %c0_i32 = arith.constant 0 : i32
    %c0_i32_0 = arith.constant 0 : i32
    %c0_i32_1 = arith.constant 0 : i32
    return %c0_i32, %c0_i32_0 : i32, i32
  }
  func.func @transform_3(%arg0: i32) -> (i32, i32) {
    %c0_i32 = arith.constant 0 : i32
    %c0_i32_0 = arith.constant 0 : i32
    %c0_i32_1 = arith.constant 0 : i32
    return %c0_i32, %c0_i32_0 : i32, i32
  }
  func.func @transform_4(%arg0: i32) -> (i32, i32) {
    %c0_i32 = arith.constant 0 : i32
    %c0_i32_0 = arith.constant 0 : i32
    %c0_i32_1 = arith.constant 0 : i32
    return %c0_i32, %c0_i32_0 : i32, i32
  }
  func.func @transform_5(%arg0: i32) -> (i32, i32) {
    %c0_i32 = arith.constant 0 : i32
    %c0_i32_0 = arith.constant 0 : i32
    return %arg0, %c0_i32 : i32, i32
  }
}

</mosaic_0001>

<llo_original>
// kernel: tpu_custom_call.1
$region0: #{tpu_custom_call.1}
  #allocation0 [shape = 'u32[]', space=smem, size = 0x4, offset = 0x4, fixed_abs, tag = 'smem constant byte address 0x4 - core index']
  #allocation1 [shape = 'u32[144,128]{1,0:T(1,128)}', space=vmem, size = 0x12000, scoped, tag = 'internal scratch']
  %s0 = inlined_call_operand.hbm [shape: bf16[16,256], index: 0, kind: input, shape index: {}]
  %s1 = inlined_call_operand.vmem [shape: bf16[16,6], index: 1, kind: input, shape index: {}]
  %s2 = inlined_call_operand.hbm [shape: bf16[256,128], index: 2, kind: input, shape index: {}]
  %s3 = inlined_call_operand.vmem [shape: bf16[6,128], index: 3, kind: input, shape index: {}]
  %s4 = inlined_call_operand.vmem [shape: f32[1,128], index: 4, kind: input, shape index: {}]
  %s5 = inlined_call_operand.hbm [shape: f32[16,128], index: 5, kind: output, shape index: {}]
  %s6 = sld [smem:[#allocation0]]
  $region38: #{tpu_custom_call.1} parent=0
    _
  %s8 = ssub.s32 1, %s6
  %s9 = scalar_select 0, %s8, %s6
  $region1: #{tpu_custom_call.1} parent=0
    #allocation2 [shape = 'u8[8192]{0}', space=vmem, size = 0x2000, scoped, tag = 'input window, operand 0, single buffered']
    #allocation3 [shape = 's32[1]{0}', space=sflag, size = 0x4, scoped, tag = 'scoped memory for tpu_custom_call.1']
    #allocation4 [shape = 's32[1]{0}', space=sflag, size = 0x4, scoped, tag = 'scoped memory for tpu_custom_call.1']
    #allocation5 [shape = 'u8[65536]{0}', space=vmem, size = 0x10000, scoped, tag = 'input window, operand 2, single buffered']
    #allocation6 [shape = 's32[1]{0}', space=sflag, size = 0x4, scoped, tag = 'scoped memory for tpu_custom_call.1']
    #allocation7 [shape = 'u8[8192]{0}', space=vmem, size = 0x2000, scoped, tag = 'output window, operand 0, single buffered']
    %10 = vsyncpa [#allocation3], 0
    %11 = vsyncpa [#allocation6], 0
    %12 = vsyncpa [#allocation4], 0
    // Predicated region
    $region2: #{tpu_custom_call.1} parent=1 // pred_check
      _
    $region3: #{tpu_custom_call.1} parent=1 // pred_check_branch
      %14 = sbr.rel (0) target = $region5
    $region4: #{tpu_custom_call.1} parent=1 // pred_region
      %s16 = ssub.s32 256, 256
      %17 = vsyncadd [#allocation3], %s16
      %s18 = sshll.u32 [#allocation2], 4
      %s19 = int_to_ptr.vmem [resolvable:$true] %s18
      %24 = dma.hbm_to_vmem [thread:$0]  %s0, 256, %s19, [#allocation3], 128, 128, 8
    $region5: #{tpu_custom_call.1} parent=1 // pred_fallthru
      _
    // Predicated region
    $region6: #{tpu_custom_call.1} parent=1 // pred_check
      _
    $region7: #{tpu_custom_call.1} parent=1 // pred_check_branch
      %26 = sbr.rel (0) target = $region9
    $region8: #{tpu_custom_call.1} parent=1 // pred_region
      _
    $region9: #{tpu_custom_call.1} parent=1 // pred_fallthru
      _
    // Predicated region
    $region10: #{tpu_custom_call.1} parent=1 // pred_check
      _
    $region11: #{tpu_custom_call.1} parent=1 // pred_check_branch
      %28 = sbr.rel (0) target = $region13
    $region12: #{tpu_custom_call.1} parent=1 // pred_region
      %s30 = ssub.s32 2048, 2048
      %31 = vsyncadd [#allocation6], %s30
      %s32 = sshll.u32 [#allocation5], 4
      %s33 = int_to_ptr.vmem [resolvable:$true] %s32
      %38 = dma.hbm_to_vmem [thread:$0]  %s2, 2048, %s33, [#allocation6], 64, 64, 4
    $region13: #{tpu_custom_call.1} parent=1 // pred_fallthru
      _
    // Predicated region
    $region14: #{tpu_custom_call.1} parent=1 // pred_check
      _
    $region15: #{tpu_custom_call.1} parent=1 // pred_check_branch
      %40 = sbr.rel (0) target = $region17
    $region16: #{tpu_custom_call.1} parent=1 // pred_region
      _
    $region17: #{tpu_custom_call.1} parent=1 // pred_fallthru
      _
    // Predicated region
    $region18: #{tpu_custom_call.1} parent=1 // pred_check
      _
    $region19: #{tpu_custom_call.1} parent=1 // pred_check_branch
      %42 = sbr.rel (0) target = $region21
    $region20: #{tpu_custom_call.1} parent=1 // pred_region
      _
    $region21: #{tpu_custom_call.1} parent=1 // pred_fallthru
      _
    // Predicated region
    $region22: #{tpu_custom_call.1} parent=1 // pred_check
      _
    $region23: #{tpu_custom_call.1} parent=1 // pred_check_branch
      %44 = sbr.rel (0) target = $region25
    $region24: #{tpu_custom_call.1} parent=1 // pred_region
      %45 = dma.done [#allocation3], 256
    $region25: #{tpu_custom_call.1} parent=1 // pred_fallthru
      _
    // Predicated region
    $region26: #{tpu_custom_call.1} parent=1 // pred_check
      _
    $region27: #{tpu_custom_call.1} parent=1 // pred_check_branch
      %47 = sbr.rel (0) target = $region29
    $region28: #{tpu_custom_call.1} parent=1 // pred_region
      %48 = dma.done [#allocation6], 2048
    $region29: #{tpu_custom_call.1} parent=1 // pred_fallthru
      _
    %v50 = vld [vmem:[#allocation2] sm:$0xff]
    %v51 = vld [vmem:[#allocation2 + $0x8] sm:$0xff]
    %v52 = vld [vmem:[#allocation5] sm:$0xf]
    %v53 = vld [vmem:[#allocation5 + $0x4] sm:$0xf]
    %v54 = vld [vmem:[#allocation5 + $0x8] sm:$0xf]
    %v55 = vld [vmem:[#allocation5 + $0xc] sm:$0xf]
    %v56 = vld [vmem:[#allocation5 + $0x10] sm:$0xf]
    %v57 = vld [vmem:[#allocation5 + $0x14] sm:$0xf]
    %v58 = vld [vmem:[#allocation5 + $0x18] sm:$0xf]
    %v59 = vld [vmem:[#allocation5 + $0x1c] sm:$0xf]
    %v60 = vld [vmem:[#allocation5 + $0x20] sm:$0xf]
    %v61 = vld [vmem:[#allocation5 + $0x24] sm:$0xf]
    %v62 = vld [vmem:[#allocation5 + $0x28] sm:$0xf]
    %v63 = vld [vmem:[#allocation5 + $0x2c] sm:$0xf]
    %v64 = vld [vmem:[#allocation5 + $0x30] sm:$0xf]
    %v65 = vld [vmem:[#allocation5 + $0x34] sm:$0xf]
    %v66 = vld [vmem:[#allocation5 + $0x38] sm:$0xf]
    %v67 = vld [vmem:[#allocation5 + $0x3c] sm:$0xf]
    %v68 = vld [vmem:[#allocation5 + $0x40] sm:$0xf]
    %v69 = vld [vmem:[#allocation5 + $0x44] sm:$0xf]
    %v70 = vld [vmem:[#allocation5 + $0x48] sm:$0xf]
    %v71 = vld [vmem:[#allocation5 + $0x4c] sm:$0xf]
    %v72 = vld [vmem:[#allocation5 + $0x50] sm:$0xf]
    %v73 = vld [vmem:[#allocation5 + $0x54] sm:$0xf]
    %v74 = vld [vmem:[#allocation5 + $0x58] sm:$0xf]
    %v75 = vld [vmem:[#allocation5 + $0x5c] sm:$0xf]
    %v76 = vld [vmem:[#allocation5 + $0x60] sm:$0xf]
    %v77 = vld [vmem:[#allocation5 + $0x64] sm:$0xf]
    %v78 = vld [vmem:[#allocation5 + $0x68] sm:$0xf]
    %v79 = vld [vmem:[#allocation5 + $0x6c] sm:$0xf]
    %v80 = vld [vmem:[#allocation5 + $0x70] sm:$0xf]
    %v81 = vld [vmem:[#allocation5 + $0x74] sm:$0xf]
    %v82 = vld [vmem:[#allocation5 + $0x78] sm:$0xf]
    %v83 = vld [vmem:[#allocation5 + $0x7c] sm:$0xf]
    %v84 = vld [vmem:[%s1] sm:$0xf]
    %v85 = vld [vmem:[%s1 + $0x4] sm:$0xf]
    %v86 = vld [vmem:[%s3] sm:$0x7]
    %v89 = vunpack.c.l.b16 %v84
    %v90 = vunpack.c.l.b16 %v85
    %v91 = vpack.c.b16 %v90, %v89
    %vm92 = vcmask 48128
    %v94 = vsel %vm92, %v91, 0
    %vm96 = vcmask 1042432
    %v98 = vsel %vm96, %v86, 0
    %100 = vmatprep.subr.bf16.mxu0 0
    %101 = vmatpush1.bf16.msra.mxu0 %v98
    %102 = vmatprep.subr.bf16.mxu0 0
    %103 = vmatpush1.bf16.msra.mxu0 0
    %104 = vmatprep.subr.bf16.mxu0 0
    %105 = vmatpush1.bf16.msra.mxu0 0
    %106 = vmatprep.subr.bf16.mxu0 0
    %107 = vmatpush1.bf16.msra.mxu0 0
    %108 = vmatprep.subr.bf16.mxu0 0
    %109 = vmatpush1.bf16.msra.mxu0 0
    %110 = vmatprep.subr.bf16.mxu0 0
    %111 = vmatpush1.bf16.msra.mxu0 0
    %112 = vmatprep.subr.bf16.mxu0 0
    %113 = vmatpush1.bf16.msra.mxu0 0
    %114 = vmatprep.subr.bf16.mxu0 0
    %115 = vmatpush1.bf16.msra.mxu0 0
    %116 = vmatprep.subr.bf16.mxu0 0
    %117 = vmatpush1.bf16.msra.mxu0 0
    %118 = vmatprep.subr.bf16.mxu0 0
    %119 = vmatpush1.bf16.msra.mxu0 0
    %120 = vmatprep.subr.bf16.mxu0 0
    %121 = vmatpush1.bf16.msra.mxu0 0
    %122 = vmatprep.subr.bf16.mxu0 0
    %123 = vmatpush1.bf16.msra.mxu0 0
    %124 = vmatprep.subr.bf16.mxu0 0
    %125 = vmatpush1.bf16.msra.mxu0 0
    %126 = vmatprep.subr.bf16.mxu0 0
    %127 = vmatpush1.bf16.msra.mxu0 0
    %128 = vmatprep.subr.bf16.mxu0 0
    %129 = vmatpush1.bf16.msra.mxu0 0
    %130 = vmatprep.subr.bf16.mxu0 0
    %131 = vmatpush1.bf16.msra.mxu0 0
    %132 = vmatprep.mubr.bf16.mxu0 0
    %133 = vmatmul.mubr.bf16.gmra.mrb[0].mxu0 %v94
    %v134 = vpop.f32.mrb[0].mxu0
    %v135 = vadd.f32 0.0, %v134
    %v136 = vpop.f32.mrb[0].mxu0
    %v137 = vpop.f32.mrb[0].mxu0
    %v138 = vadd.f32 0.0, %v137
    %v139 = vpop.f32.mrb[0].mxu0
    %140 = vdwg.mxu0
    %v143 = vunpack.c.l.b16 %v50
    %v144 = vunpack.c.h.b16 %v50
    %v145 = vunpack.c.l.b16 %v51
    %v146 = vunpack.c.h.b16 %v51
    %v147 = vpack.c.b16 %v145, %v143
    %v148 = vpack.c.b16 %v146, %v144
    %v183 = vunpack.c.l.b16 %v52
    %v184 = vunpack.c.l.b16 %v53
    %v185 = vunpack.c.l.b16 %v54
    %v186 = vunpack.c.l.b16 %v55
    %v187 = vunpack.c.l.b16 %v56
    %v188 = vunpack.c.l.b16 %v57
    %v189 = vunpack.c.l.b16 %v58
    %v190 = vunpack.c.l.b16 %v59
    %v191 = vunpack.c.l.b16 %v60
    %v192 = vunpack.c.l.b16 %v61
    %v193 = vunpack.c.l.b16 %v62
    %v194 = vunpack.c.l.b16 %v63
    %v195 = vunpack.c.l.b16 %v64
    %v196 = vunpack.c.l.b16 %v65
    %v197 = vunpack.c.l.b16 %v66
    %v198 = vunpack.c.l.b16 %v67
    %v199 = vunpack.c.l.b16 %v68
    %v200 = vunpack.c.l.b16 %v69
    %v201 = vunpack.c.l.b16 %v70
    %v202 = vunpack.c.l.b16 %v71
    %v203 = vunpack.c.l.b16 %v72
    %v204 = vunpack.c.l.b16 %v73
    %v205 = vunpack.c.l.b16 %v74
    %v206 = vunpack.c.l.b16 %v75
    %v207 = vunpack.c.l.b16 %v76
    %v208 = vunpack.c.l.b16 %v77
    %v209 = vunpack.c.l.b16 %v78
    %v210 = vunpack.c.l.b16 %v79
    %v211 = vunpack.c.l.b16 %v80
    %v212 = vunpack.c.l.b16 %v81
    %v213 = vunpack.c.l.b16 %v82
    %v214 = vunpack.c.l.b16 %v83
    %v215 = vpack.c.b16 %v184, %v183
    %v216 = vpack.c.b16 %v186, %v185
    %v217 = vpack.c.b16 %v188, %v187
    %v218 = vpack.c.b16 %v190, %v189
    %v219 = vpack.c.b16 %v192, %v191
    %v220 = vpack.c.b16 %v194, %v193
    %v221 = vpack.c.b16 %v196, %v195
    %v222 = vpack.c.b16 %v198, %v197
    %v223 = vpack.c.b16 %v200, %v199
    %v224 = vpack.c.b16 %v202, %v201
    %v225 = vpack.c.b16 %v204, %v203
    %v226 = vpack.c.b16 %v206, %v205
    %v227 = vpack.c.b16 %v208, %v207
    %v228 = vpack.c.b16 %v210, %v209
    %v229 = vpack.c.b16 %v212, %v211
    %v230 = vpack.c.b16 %v214, %v213
    %247 = vmatprep.subr.bf16.mxu0 0
    %248 = vmatpush1.bf16.msra.mxu0 %v215
    %249 = vmatprep.subr.bf16.mxu0 0
    %250 = vmatpush1.bf16.msra.mxu0 %v216
    %251 = vmatprep.subr.bf16.mxu0 0
    %252 = vmatpush1.bf16.msra.mxu0 %v217
    %253 = vmatprep.subr.bf16.mxu0 0
    %254 = vmatpush1.bf16.msra.mxu0 %v218
    %255 = vmatprep.subr.bf16.mxu0 0
    %256 = vmatpush1.bf16.msra.mxu0 %v219
    %257 = vmatprep.subr.bf16.mxu0 0
    %258 = vmatpush1.bf16.msra.mxu0 %v220
    %259 = vmatprep.subr.bf16.mxu0 0
    %260 = vmatpush1.bf16.msra.mxu0 %v221
    %261 = vmatprep.subr.bf16.mxu0 0
    %262 = vmatpush1.bf16.msra.mxu0 %v222
    %263 = vmatprep.subr.bf16.mxu0 0
    %264 = vmatpush1.bf16.msra.mxu0 %v223
    %265 = vmatprep.subr.bf16.mxu0 0
    %266 = vmatpush1.bf16.msra.mxu0 %v224
    %267 = vmatprep.subr.bf16.mxu0 0
    %268 = vmatpush1.bf16.msra.mxu0 %v225
    %269 = vmatprep.subr.bf16.mxu0 0
    %270 = vmatpush1.bf16.msra.mxu0 %v226
    %271 = vmatprep.subr.bf16.mxu0 0
    %272 = vmatpush1.bf16.msra.mxu0 %v227
    %273 = vmatprep.subr.bf16.mxu0 0
    %274 = vmatpush1.bf16.msra.mxu0 %v228
    %275 = vmatprep.subr.bf16.mxu0 0
    %276 = vmatpush1.bf16.msra.mxu0 %v229
    %277 = vmatprep.subr.bf16.mxu0 0
    %278 = vmatpush1.bf16.msra.mxu0 %v230
    %279 = vmatprep.mubr.bf16.mxu0 %v148
    %280 = vmatmul.mubr.bf16.gmra.mrb[0].mxu0 %v147
    %v281 = vpop.f32.mrb[0].mxu0
    %v282 = vadd.f32 %v135, %v281
    %v283 = vpop.f32.mrb[0].mxu0
    %v284 = vpop.f32.mrb[0].mxu0
    %v285 = vadd.f32 %v138, %v284
    %v286 = vpop.f32.mrb[0].mxu0
    %287 = vdwg.mxu0
    %v288 = vld [vmem:[%s4] sm:$0x1]
    %v290 = vlaneseq
    %v291 = vshrl.u32 %v290, 7
    %v292 = vsub.s32 0, %v291
    %v293 = vrot.slane %v288, %v292
    %v295 = vadd.f32 %v282, %v293
    %v296 = vadd.f32 %v285, %v293
    %v297 = vmax.f32 %v295, 0.0
    %v298 = vmax.f32 %v296, 0.0
    %299 = vst [vmem:[#allocation7] sm:$0xff] %v297
    %300 = vst [vmem:[#allocation7 + $0x8] sm:$0xff] %v298
    // Predicated region
    $region30: #{tpu_custom_call.1} parent=1 // pred_check
      _
    $region31: #{tpu_custom_call.1} parent=1 // pred_check_branch
      %302 = sbr.rel (0) target = $region33
    $region32: #{tpu_custom_call.1} parent=1 // pred_region
      %s304 = ssub.s32 256, 256
      %305 = vsyncadd [#allocation4], %s304
      %s306 = sshll.u32 [#allocation7], 4
      %s307 = int_to_ptr.vmem [resolvable:$true] %s306
      %312 = dma.vmem_to_hbm [thread:$0]  %s307, 256, %s5, [#allocation4], 128, 128, 8
    $region33: #{tpu_custom_call.1} parent=1 // pred_fallthru
      _
    // Predicated region
    $region34: #{tpu_custom_call.1} parent=1 // pred_check
      _
    $region35: #{tpu_custom_call.1} parent=1 // pred_check_branch
      %314 = sbr.rel (0) target = $region37
    $region36: #{tpu_custom_call.1} parent=1 // pred_region
      %315 = dma.done [#allocation4], 256
    $region37: #{tpu_custom_call.1} parent=1 // pred_fallthru
      _
    %316 = vsyncpa [#allocation3], 1
    %317 = vsyncpa [#allocation6], 1
    %318 = vsyncpa [#allocation4], 1

// kernel: tpu_custom_call.1
$region0: #{tpu_custom_call.1}
  #allocation0 [shape = 'u32[]', space=smem, size = 0x4, offset = 0x4, fixed_abs, tag = 'smem constant byte address 0x4 - core index']
  #allocation1 [shape = 'u32[144,128]{1,0:T(1,128)}', space=vmem, size = 0x12000, scoped, tag = 'internal scratch']
  %s0 = inlined_call_operand.hbm [shape: bf16[16,256], index: 0, kind: input, shape index: {}]
  %s1 = inlined_call_operand.vmem [shape: bf16[16,6], index: 1, kind: input, shape index: {}]
  %s2 = inlined_call_operand.hbm [shape: bf16[256,128], index: 2, kind: input, shape index: {}]
  %s3 = inlined_call_operand.vmem [shape: bf16[6,128], index: 3, kind: input, shape index: {}]
  %s4 = inlined_call_operand.vmem [shape: f32[1,128], index: 4, kind: input, shape index: {}]
  %s5 = inlined_call_operand.hbm [shape: f32[16,128], index: 5, kind: output, shape index: {}]
  %s6 = sld [smem:[#allocation0]]
  $region38: #{tpu_custom_call.1} parent=0
    _
  %s8 = ssub.s32 1, %s6
  %s9 = scalar_select 0, %s8, %s6
  $region1: #{tpu_custom_call.1} parent=0
    #allocation2 [shape = 'u8[8192]{0}', space=vmem, size = 0x2000, scoped, tag = 'input window, operand 0, single buffered']
    #allocation3 [shape = 's32[1]{0}', space=sflag, size = 0x4, scoped, tag = 'scoped memory for tpu_custom_call.1']
    #allocation4 [shape = 's32[1]{0}', space=sflag, size = 0x4, scoped, tag = 'scoped memory for tpu_custom_call.1']
    #allocation5 [shape = 'u8[65536]{0}', space=vmem, size = 0x10000, scoped, tag = 'input window, operand 2, single buffered']
    #allocation6 [shape = 's32[1]{0}', space=sflag, size = 0x4, scoped, tag = 'scoped memory for tpu_custom_call.1']
    #allocation7 [shape = 'u8[8192]{0}', space=vmem, size = 0x2000, scoped, tag = 'output window, operand 0, single buffered']
    %10 = vsyncpa [#allocation3], 0
    %11 = vsyncpa [#allocation6], 0
    %12 = vsyncpa [#allocation4], 0
    // Predicated region
    $region2: #{tpu_custom_call.1} parent=1 // pred_check
      _
    $region3: #{tpu_custom_call.1} parent=1 // pred_check_branch
      %14 = sbr.rel (0) target = $region5
    $region4: #{tpu_custom_call.1} parent=1 // pred_region
      %s16 = ssub.s32 256, 256
      %17 = vsyncadd [#allocation3], %s16
      %s18 = sshll.u32 [#allocation2], 4
      %s19 = int_to_ptr.vmem [resolvable:$true] %s18
      %24 = dma.hbm_to_vmem [thread:$0]  %s0, 256, %s19, [#allocation3], 128, 128, 8
    $region5: #{tpu_custom_call.1} parent=1 // pred_fallthru
      _
    // Predicated region
    $region6: #{tpu_custom_call.1} parent=1 // pred_check
      _
    $region7: #{tpu_custom_call.1} parent=1 // pred_check_branch
      %26 = sbr.rel (0) target = $region9
    $region8: #{tpu_custom_call.1} parent=1 // pred_region
      _
    $region9: #{tpu_custom_call.1} parent=1 // pred_fallthru
      _
    // Predicated region
    $region10: #{tpu_custom_call.1} parent=1 // pred_check
      _
    $region11: #{tpu_custom_call.1} parent=1 // pred_check_branch
      %28 = sbr.rel (0) target = $region13
    $region12: #{tpu_custom_call.1} parent=1 // pred_region
      %s30 = ssub.s32 2048, 2048
      %31 = vsyncadd [#allocation6], %s30
      %s32 = sshll.u32 [#allocation5], 4
      %s33 = int_to_ptr.vmem [resolvable:$true] %s32
      %38 = dma.hbm_to_vmem [thread:$0]  %s2, 2048, %s33, [#allocation6], 64, 64, 4
    $region13: #{tpu_custom_call.1} parent=1 // pred_fallthru
      _
    // Predicated region
    $region14: #{tpu_custom_call.1} parent=1 // pred_check
      _
    $region15: #{tpu_custom_call.1} parent=1 // pred_check_branch
      %40 = sbr.rel (0) target = $region17
    $region16: #{tpu_custom_call.1} parent=1 // pred_region
      _
    $region17: #{tpu_custom_call.1} parent=1 // pred_fallthru
      _
    // Predicated region
    $region18: #{tpu_custom_call.1} parent=1 // pred_check
      _
    $region19: #{tpu_custom_call.1} parent=1 // pred_check_branch
      %42 = sbr.rel (0) target = $region21
    $region20: #{tpu_custom_call.1} parent=1 // pred_region
      _
    $region21: #{tpu_custom_call.1} parent=1 // pred_fallthru
      _
    // Predicated region
    $region22: #{tpu_custom_call.1} parent=1 // pred_check
      _
    $region23: #{tpu_custom_call.1} parent=1 // pred_check_branch
      %44 = sbr.rel (0) target = $region25
    $region24: #{tpu_custom_call.1} parent=1 // pred_region
      %45 = dma.done [#allocation3], 256
    $region25: #{tpu_custom_call.1} parent=1 // pred_fallthru
      _
    // Predicated region
    $region26: #{tpu_custom_call.1} parent=1 // pred_check
      _
    $region27: #{tpu_custom_call.1} parent=1 // pred_check_branch
      %47 = sbr.rel (0) target = $region29
    $region28: #{tpu_custom_call.1} parent=1 // pred_region
      %48 = dma.done [#allocation6], 2048
    $region29: #{tpu_custom_call.1} parent=1 // pred_fallthru
      _
    %v50 = vld [vmem:[#allocation2] sm:$0xff]
    %v51 = vld [vmem:[#allocation2 + $0x8] sm:$0xff]
    %v52 = vld [vmem:[#allocation5] sm:$0xf]
    %v53 = vld [vmem:[#allocation5 + $0x4] sm:$0xf]
    %v54 = vld [vmem:[#allocation5 + $0x8] sm:$0xf]
    %v55 = vld [vmem:[#allocation5 + $0xc] sm:$0xf]
    %v56 = vld [vmem:[#allocation5 + $0x10] sm:$0xf]
    %v57 = vld [vmem:[#allocation5 + $0x14] sm:$0xf]
    %v58 = vld [vmem:[#allocation5 + $0x18] sm:$0xf]
    %v59 = vld [vmem:[#allocation5 + $0x1c] sm:$0xf]
    %v60 = vld [vmem:[#allocation5 + $0x20] sm:$0xf]
    %v61 = vld [vmem:[#allocation5 + $0x24] sm:$0xf]
    %v62 = vld [vmem:[#allocation5 + $0x28] sm:$0xf]
    %v63 = vld [vmem:[#allocation5 + $0x2c] sm:$0xf]
    %v64 = vld [vmem:[#allocation5 + $0x30] sm:$0xf]
    %v65 = vld [vmem:[#allocation5 + $0x34] sm:$0xf]
    %v66 = vld [vmem:[#allocation5 + $0x38] sm:$0xf]
    %v67 = vld [vmem:[#allocation5 + $0x3c] sm:$0xf]
    %v68 = vld [vmem:[#allocation5 + $0x40] sm:$0xf]
    %v69 = vld [vmem:[#allocation5 + $0x44] sm:$0xf]
    %v70 = vld [vmem:[#allocation5 + $0x48] sm:$0xf]
    %v71 = vld [vmem:[#allocation5 + $0x4c] sm:$0xf]
    %v72 = vld [vmem:[#allocation5 + $0x50] sm:$0xf]
    %v73 = vld [vmem:[#allocation5 + $0x54] sm:$0xf]
    %v74 = vld [vmem:[#allocation5 + $0x58] sm:$0xf]
    %v75 = vld [vmem:[#allocation5 + $0x5c] sm:$0xf]
    %v76 = vld [vmem:[#allocation5 + $0x60] sm:$0xf]
    %v77 = vld [vmem:[#allocation5 + $0x64] sm:$0xf]
    %v78 = vld [vmem:[#allocation5 + $0x68] sm:$0xf]
    %v79 = vld [vmem:[#allocation5 + $0x6c] sm:$0xf]
    %v80 = vld [vmem:[#allocation5 + $0x70] sm:$0xf]
    %v81 = vld [vmem:[#allocation5 + $0x74] sm:$0xf]
    %v82 = vld [vmem:[#allocation5 + $0x78] sm:$0xf]
    %v83 = vld [vmem:[#allocation5 + $0x7c] sm:$0xf]
    %v84 = vld [vmem:[%s1] sm:$0xf]
    %v85 = vld [vmem:[%s1 + $0x4] sm:$0xf]
    %v86 = vld [vmem:[%s3] sm:$0x7]
    %v89 = vunpack.c.l.b16 %v84
    %v90 = vunpack.c.l.b16 %v85
    %v91 = vpack.c.b16 %v90, %v89
    %vm92 = vcmask 48128
    %v94 = vsel %vm92, %v91, 0
    %vm96 = vcmask 1042432
    %v98 = vsel %vm96, %v86, 0
    %100 = vmatprep.subr.bf16.mxu0 0
    %101 = vmatpush1.bf16.msra.mxu0 %v98
    %102 = vmatprep.subr.bf16.mxu0 0
    %103 = vmatpush1.bf16.msra.mxu0 0
    %104 = vmatprep.subr.bf16.mxu0 0
    %105 = vmatpush1.bf16.msra.mxu0 0
    %106 = vmatprep.subr.bf16.mxu0 0
    %107 = vmatpush1.bf16.msra.mxu0 0
    %108 = vmatprep.subr.bf16.mxu0 0
    %109 = vmatpush1.bf16.msra.mxu0 0
    %110 = vmatprep.subr.bf16.mxu0 0
    %111 = vmatpush1.bf16.msra.mxu0 0
    %112 = vmatprep.subr.bf16.mxu0 0
    %113 = vmatpush1.bf16.msra.mxu0 0
    %114 = vmatprep.subr.bf16.mxu0 0
    %115 = vmatpush1.bf16.msra.mxu0 0
    %116 = vmatprep.subr.bf16.mxu0 0
    %117 = vmatpush1.bf16.msra.mxu0 0
    %118 = vmatprep.subr.bf16.mxu0 0
    %119 = vmatpush1.bf16.msra.mxu0 0
    %120 = vmatprep.subr.bf16.mxu0 0
    %121 = vmatpush1.bf16.msra.mxu0 0
    %122 = vmatprep.subr.bf16.mxu0 0
    %123 = vmatpush1.bf16.msra.mxu0 0
    %124 = vmatprep.subr.bf16.mxu0 0
    %125 = vmatpush1.bf16.msra.mxu0 0
    %126 = vmatprep.subr.bf16.mxu0 0
    %127 = vmatpush1.bf16.msra.mxu0 0
    %128 = vmatprep.subr.bf16.mxu0 0
    %129 = vmatpush1.bf16.msra.mxu0 0
    %130 = vmatprep.subr.bf16.mxu0 0
    %131 = vmatpush1.bf16.msra.mxu0 0
    %132 = vmatprep.mubr.bf16.mxu0 0
    %133 = vmatmul.mubr.bf16.gmra.mrb[0].mxu0 %v94
    %v134 = vpop.f32.mrb[0].mxu0
    %v135 = vadd.f32 0.0, %v134
    %v136 = vpop.f32.mrb[0].mxu0
    %v137 = vpop.f32.mrb[0].mxu0
    %v138 = vadd.f32 0.0, %v137
    %v139 = vpop.f32.mrb[0].mxu0
    %140 = vdwg.mxu0
    %v143 = vunpack.c.l.b16 %v50
    %v144 = vunpack.c.h.b16 %v50
    %v145 = vunpack.c.l.b16 %v51
    %v146 = vunpack.c.h.b16 %v51
    %v147 = vpack.c.b16 %v145, %v143
    %v148 = vpack.c.b16 %v146, %v144
    %v183 = vunpack.c.l.b16 %v52
    %v184 = vunpack.c.l.b16 %v53
    %v185 = vunpack.c.l.b16 %v54
    %v186 = vunpack.c.l.b16 %v55
    %v187 = vunpack.c.l.b16 %v56
    %v188 = vunpack.c.l.b16 %v57
    %v189 = vunpack.c.l.b16 %v58
    %v190 = vunpack.c.l.b16 %v59
    %v191 = vunpack.c.l.b16 %v60
    %v192 = vunpack.c.l.b16 %v61
    %v193 = vunpack.c.l.b16 %v62
    %v194 = vunpack.c.l.b16 %v63
    %v195 = vunpack.c.l.b16 %v64
    %v196 = vunpack.c.l.b16 %v65
    %v197 = vunpack.c.l.b16 %v66
    %v198 = vunpack.c.l.b16 %v67
    %v199 = vunpack.c.l.b16 %v68
    %v200 = vunpack.c.l.b16 %v69
    %v201 = vunpack.c.l.b16 %v70
    %v202 = vunpack.c.l.b16 %v71
    %v203 = vunpack.c.l.b16 %v72
    %v204 = vunpack.c.l.b16 %v73
    %v205 = vunpack.c.l.b16 %v74
    %v206 = vunpack.c.l.b16 %v75
    %v207 = vunpack.c.l.b16 %v76
    %v208 = vunpack.c.l.b16 %v77
    %v209 = vunpack.c.l.b16 %v78
    %v210 = vunpack.c.l.b16 %v79
    %v211 = vunpack.c.l.b16 %v80
    %v212 = vunpack.c.l.b16 %v81
    %v213 = vunpack.c.l.b16 %v82
    %v214 = vunpack.c.l.b16 %v83
    %v215 = vpack.c.b16 %v184, %v183
    %v216 = vpack.c.b16 %v186, %v185
    %v217 = vpack.c.b16 %v188, %v187
    %v218 = vpack.c.b16 %v190, %v189
    %v219 = vpack.c.b16 %v192, %v191
    %v220 = vpack.c.b16 %v194, %v193
    %v221 = vpack.c.b16 %v196, %v195
    %v222 = vpack.c.b16 %v198, %v197
    %v223 = vpack.c.b16 %v200, %v199
    %v224 = vpack.c.b16 %v202, %v201
    %v225 = vpack.c.b16 %v204, %v203
    %v226 = vpack.c.b16 %v206, %v205
    %v227 = vpack.c.b16 %v208, %v207
    %v228 = vpack.c.b16 %v210, %v209
    %v229 = vpack.c.b16 %v212, %v211
    %v230 = vpack.c.b16 %v214, %v213
    %247 = vmatprep.subr.bf16.mxu0 0
    %248 = vmatpush1.bf16.msra.mxu0 %v215
    %249 = vmatprep.subr.bf16.mxu0 0
    %250 = vmatpush1.bf16.msra.mxu0 %v216
    %251 = vmatprep.subr.bf16.mxu0 0
    %252 = vmatpush1.bf16.msra.mxu0 %v217
    %253 = vmatprep.subr.bf16.mxu0 0
    %254 = vmatpush1.bf16.msra.mxu0 %v218
    %255 = vmatprep.subr.bf16.mxu0 0
    %256 = vmatpush1.bf16.msra.mxu0 %v219
    %257 = vmatprep.subr.bf16.mxu0 0
    %258 = vmatpush1.bf16.msra.mxu0 %v220
    %259 = vmatprep.subr.bf16.mxu0 0
    %260 = vmatpush1.bf16.msra.mxu0 %v221
    %261 = vmatprep.subr.bf16.mxu0 0
    %262 = vmatpush1.bf16.msra.mxu0 %v222
    %263 = vmatprep.subr.bf16.mxu0 0
    %264 = vmatpush1.bf16.msra.mxu0 %v223
    %265 = vmatprep.subr.bf16.mxu0 0
    %266 = vmatpush1.bf16.msra.mxu0 %v224
    %267 = vmatprep.subr.bf16.mxu0 0
    %268 = vmatpush1.bf16.msra.mxu0 %v225
    %269 = vmatprep.subr.bf16.mxu0 0
    %270 = vmatpush1.bf16.msra.mxu0 %v226
    %271 = vmatprep.subr.bf16.mxu0 0
    %272 = vmatpush1.bf16.msra.mxu0 %v227
    %273 = vmatprep.subr.bf16.mxu0 0
    %274 = vmatpush1.bf16.msra.mxu0 %v228
    %275 = vmatprep.subr.bf16.mxu0 0
    %276 = vmatpush1.bf16.msra.mxu0 %v229
    %277 = vmatprep.subr.bf16.mxu0 0
    %278 = vmatpush1.bf16.msra.mxu0 %v230
    %279 = vmatprep.mubr.bf16.mxu0 %v148
    %280 = vmatmul.mubr.bf16.gmra.mrb[0].mxu0 %v147
    %v281 = vpop.f32.mrb[0].mxu0
    %v282 = vadd.f32 %v135, %v281
    %v283 = vpop.f32.mrb[0].mxu0
    %v284 = vpop.f32.mrb[0].mxu0
    %v285 = vadd.f32 %v138, %v284
    %v286 = vpop.f32.mrb[0].mxu0
    %287 = vdwg.mxu0
    %v288 = vld [vmem:[%s4] sm:$0x1]
    %v290 = vlaneseq
    %v291 = vshrl.u32 %v290, 7
    %v292 = vsub.s32 0, %v291
    %v293 = vrot.slane %v288, %v292
    %v295 = vadd.f32 %v282, %v293
    %v296 = vadd.f32 %v285, %v293
    %v297 = vmax.f32 %v295, 0.0
    %v298 = vmax.f32 %v296, 0.0
    %299 = vst [vmem:[#allocation7] sm:$0xff] %v297
    %300 = vst [vmem:[#allocation7 + $0x8] sm:$0xff] %v298
    // Predicated region
    $region30: #{tpu_custom_call.1} parent=1 // pred_check
      _
    $region31: #{tpu_custom_call.1} parent=1 // pred_check_branch
      %302 = sbr.rel (0) target = $region33
    $region32: #{tpu_custom_call.1} parent=1 // pred_region
      %s304 = ssub.s32 256, 256
      %305 = vsyncadd [#allocation4], %s304
      %s306 = sshll.u32 [#allocation7], 4
      %s307 = int_to_ptr.vmem [resolvable:$true] %s306
      %312 = dma.vmem_to_hbm [thread:$0]  %s307, 256, %s5, [#allocation4], 128, 128, 8
    $region33: #{tpu_custom_call.1} parent=1 // pred_fallthru
      _
    // Predicated region
    $region34: #{tpu_custom_call.1} parent=1 // pred_check
      _
    $region35: #{tpu_custom_call.1} parent=1 // pred_check_branch
      %314 = sbr.rel (0) target = $region37
    $region36: #{tpu_custom_call.1} parent=1 // pred_region
      %315 = dma.done [#allocation4], 256
    $region37: #{tpu_custom_call.1} parent=1 // pred_fallthru
      _
    %316 = vsyncpa [#allocation3], 1
    %317 = vsyncpa [#allocation6], 1
    %318 = vsyncpa [#allocation4], 1

</llo_original>
